<compile_context>
chip_gen: v7x
topology: tpu7x:2x2x1
jax: 0.10.0
libtpu: 0.0.40
codegen_flags: <defaults>
</compile_context>

<pallas_src>
import functools

import numpy as np
import jax
import jax.numpy as jnp
from jax.experimental import pallas as pl
from jax.experimental.pallas import tpu as pltpu


def _build_encoding(max_seq_len, dim_model):
    """Host-side sinusoidal table, mirroring the PyTorch module's buffer."""
    assert dim_model % 2 == 0, "dim_model must be even (as in the torch module)"
    enc = np.zeros((max_seq_len, dim_model), dtype=np.float32)
    pos = np.arange(max_seq_len, dtype=np.float32)[:, None]
    _2i = np.arange(0, dim_model, 2, dtype=np.float32)
    div = np.power(10000.0, _2i / float(dim_model))
    enc[:, 0::2] = np.sin(pos / div)
    enc[:, 1::2] = np.cos(pos / div)
    return enc


def _posenc_kernel(x_ref, enc_ref, o_ref, *, b_tile):
    # x_ref:   (B_TILE, dim_model, seq_len)  -- module input layout (NCL)
    # enc_ref: (seq_len, dim_model)          -- precomputed table, resident
    # o_ref:   (B_TILE, seq_len, dim_model)
    enc = enc_ref[...]
    # NOTE: the block always spans the full sequence, so enc rows line up with
    # positions 0..seq_len-1.  If the seq axis is ever tiled, the enc BlockSpec
    # index_map must follow the seq block index.
    for b in range(b_tile):  # static unroll; b_tile is small (<= 8)
        # Fused permute(0, 2, 1): the 2-D transpose rides the XLU slot, which
        # has plenty of slack in this memory-bound add.  Dropout (eval) == id.
        o_ref[b] = x_ref[b].astype(o_ref.dtype).T + enc


def _choose_b_tile(batch, seq_len, dim_model, out_itemsize):
    """Pick a batch tile: big enough to amortize per-step overhead, small
    enough for v7x's 64 MiB VMEM, and keeping the grid >= 2 when batch >= 2."""
    per_b = max(1, seq_len * dim_model * out_itemsize)   # bytes per batch element
    budget = 4 * 1024 * 1024                              # per block per operand
    bt_cap = max(1, min(8, budget // per_b))              # cap static unroll at 8
    if batch >= 2:
        bt_cap = max(1, min(bt_cap, batch // 2))          # v7x: feed both TCs
    best = 1
    for cand in range(1, min(batch, bt_cap) + 1):
        if batch % cand == 0:
            best = cand
    return best


def positional_encoding(x, *, max_seq_len=130):
    """x: (batch, dim_model, seq_len) -> (batch, seq_len, dim_model)."""
    batch, dim_model, seq_len = x.shape
    assert seq_len <= max_seq_len, "seq_len exceeds max_seq_len"

    # torch promotion: x + float32 buffer -> promoted dtype (documented choice).
    out_dtype = jnp.result_type(x.dtype, jnp.float32)
    enc = jnp.asarray(_build_encoding(max_seq_len, dim_model)[:seq_len],
                      dtype=out_dtype)

    b_tile = _choose_b_tile(batch, seq_len, dim_model,
                            jnp.dtype(out_dtype).itemsize)
    grid = (batch // b_tile,)

    kernel = functools.partial(_posenc_kernel, b_tile=b_tile)
    return pl.pallas_call(
        kernel,
        out_shape=jax.ShapeDtypeStruct((batch, seq_len, dim_model), out_dtype),
        grid=grid,
        in_specs=[
            pl.BlockSpec((b_tile, dim_model, seq_len), lambda i: (i, 0, 0)),
            pl.BlockSpec((seq_len, dim_model), lambda i: (0, 0)),
        ],
        out_specs=pl.BlockSpec((b_tile, seq_len, dim_model), lambda i: (i, 0, 0)),
        compiler_params=pltpu.CompilerParams(
            dimension_semantics=("parallel",),
            vmem_limit_bytes=32 * 1024 * 1024,   # explicit, v7x-safe scoped budget
        ),
    )(x, enc)


def _reference(x_np, max_seq_len=130):
    """Pure-numpy reference mirroring the PyTorch module (eval mode)."""
    batch, dim_model, seq_len = x_np.shape
    enc = _build_encoding(max_seq_len, dim_model)[:seq_len]
    return np.transpose(x_np.astype(np.float32), (0, 2, 1)) + enc


if __name__ == "__main__":
    key = jax.random.PRNGKey(0)
    batch, dim_model, seq_len = 2, 32, 8
    x = jax.random.normal(key, (batch, dim_model, seq_len), dtype=jnp.float32)

    out = jax.block_until_ready(positional_encoding(x))

    ref = _reference(np.asarray(x))
    np.testing.assert_allclose(np.asarray(out), ref, rtol=1e-5, atol=1e-5)
    print("KERNEL_OK")
</pallas_src>

<mosaic_0001>
module attributes {stable_mosaic.version = 11 : i64} {
  func.func @_posenc_kernel(%arg0: i32, %arg1: memref<1x32x8xf32, #tpu.memory_space<vmem>>, %arg2: memref<8x32xf32, #tpu.memory_space<vmem>>, %arg3: memref<1x8x32xf32, #tpu.memory_space<vmem>>) attributes {dimension_semantics = [#tpu.dimension_semantics<parallel>], iteration_bounds = array<i64: 2>, scalar_prefetch = 0 : i64, scratch_operands = 0 : i64, tpu.core_type = #tpu.core_type<tc>, window_params = [{transform_indices = @transform_0, window_bounds = array<i64: 1, 32, 8>}, {pipeline_mode = #tpu.pipeline_mode<synchronous>, transform_indices = @transform_1, window_bounds = array<i64: 8, 32>}, {transform_indices = @transform_2, window_bounds = array<i64: 1, 8, 32>}]} {
    %c0 = arith.constant 0 : index
    %c0_0 = arith.constant 0 : index
    %0 = vector.load %arg2[%c0, %c0_0] : memref<8x32xf32, #tpu.memory_space<vmem>>, vector<8x32xf32>
    %c0_1 = arith.constant 0 : index
    %c0_2 = arith.constant 0 : index
    %c0_3 = arith.constant 0 : index
    %1 = vector.load %arg1[%c0_1, %c0_2, %c0_3] : memref<1x32x8xf32, #tpu.memory_space<vmem>>, vector<1x32x8xf32>
    %2 = vector.shape_cast %1 : vector<1x32x8xf32> to vector<32x8xf32>
    %3 = tpu.transpose %2, [1, 0] : vector<32x8xf32> -> vector<8x32xf32>
    %4 = arith.addf %3, %0 : vector<8x32xf32>
    %c0_4 = arith.constant 0 : index
    %c0_5 = arith.constant 0 : index
    %c0_6 = arith.constant 0 : index
    %5 = vector.load %arg3[%c0_4, %c0_5, %c0_6] : memref<1x8x32xf32, #tpu.memory_space<vmem>>, vector<1x8x32xf32>
    %6 = vector.shape_cast %5 : vector<1x8x32xf32> to vector<8x32xf32>
    %7 = vector.shape_cast %4 : vector<8x32xf32> to vector<1x8x32xf32>
    tpu.vector_store %arg3[%c0_4, %c0_5, %c0_6], %7 {strides = array<i32>} : memref<1x8x32xf32, #tpu.memory_space<vmem>>, vector<1x8x32xf32>,
    return
  }
  func.func @transform_0(%arg0: i32) -> (i32, i32, i32) {
    %c0_i32 = arith.constant 0 : i32
    %c0_i32_0 = arith.constant 0 : i32
    %c0_i32_1 = arith.constant 0 : i32
    return %arg0, %c0_i32, %c0_i32_0 : i32, i32, i32
  }
  func.func @transform_1(%arg0: i32) -> (i32, i32) {
    %c0_i32 = arith.constant 0 : i32
    %c0_i32_0 = arith.constant 0 : i32
    %c0_i32_1 = arith.constant 0 : i32
    return %c0_i32, %c0_i32_0 : i32, i32
  }
  func.func @transform_2(%arg0: i32) -> (i32, i32, i32) {
    %c0_i32 = arith.constant 0 : i32
    %c0_i32_0 = arith.constant 0 : i32
    %c0_i32_1 = arith.constant 0 : i32
    return %arg0, %c0_i32, %c0_i32_0 : i32, i32, i32
  }
}

</mosaic_0001>

<llo_original>
// kernel: tpu_custom_call.1
$region0: #{tpu_custom_call.1}
  #allocation0 [shape = 'u32[]', space=smem, size = 0x4, offset = 0x4, fixed_abs, tag = 'smem constant byte address 0x4 - core index']
  #allocation1 [shape = 'u32[144,128]{1,0:T(1,128)}', space=vmem, size = 0x12000, scoped, tag = 'internal scratch']
  %s0 = inlined_call_operand.vmem [shape: f32[2,32,8], index: 0, kind: input, shape index: {}]
  %s1 = inlined_call_operand.vmem [shape: f32[8,32], index: 1, kind: input, shape index: {}]
  %s2 = inlined_call_operand.hbm [shape: f32[2,8,32], index: 2, kind: output, shape index: {}]
  %s3 = sld [smem:[#allocation0]]
  $region41: #{tpu_custom_call.1} parent=0
    _
  %s5 = ssub.s32 1, %s3
  %s6 = scalar_select 0, %s5, %s3
  $region1: #{tpu_custom_call.1} parent=0
    #allocation2 [shape = 'u8[8192]{0}', space=vmem, size = 0x2000, scoped, tag = 'output window, operand 0']
    #allocation3 [shape = 's32[2]{0}', space=sflag, size = 0x8, scoped, tag = 'scoped memory for tpu_custom_call.1']
    %7 = vsyncpa [#allocation3], 0
    %s8 = scalar_lea.sflag [#allocation3], 1
    %9 = vsyncpa %s8, 0
    loop: start=0, step=1, limit=4
    $region2: #{tpu_custom_call.1} parent=1 // loop_pre_header
      _
    $region3: #{tpu_custom_call.1} parent=1 // loop_header
      %s11 = sphi 0, %s15
      %p12 = scmp.ge.s32.totalorder %s11, 4
      %s21 = sphi 0, %s23
      %s24 = sphi 0, %s21
      %s25 = sphi 0, %s24
      %s41 = sphi 0, %s25
      %s45 = sphi 0, %s45
      %s47 = sphi 0, %s45
      %s48 = sphi 0, %s47
      %s62 = sphi 0, %s48
      %s68 = sphi 0, %s70
      %s71 = sphi 0, %s68
      %s72 = sphi 0, %s71
      %s88 = sphi 0, %s72
    $region4: #{tpu_custom_call.1} parent=1 // loop_header_branch
      %14 = sbr.rel (%p12) target = $region8
    $region5: #{tpu_custom_call.1} parent=1 // loop_body
      %s16 = ssub.s32 %s11, 1
      %s17 = ssub.s32 %s11, 2
      %s18 = sadd.s32 %s11, 1
      %s19 = ssub.s32 %s11, %s18
      %p20 = scmp.eq.s32.totalorder %s19, 0
      %s22 = sadd.s32 %s21, 1
      %s23 = scalar_select %p20, %s21, %s22
      %p26 = pneg %p20
      %p27 = scmp.eq.s32.totalorder %s11, 1
      %p28 = por %p26, %p27
      %p29 = scmp.ne.s32.totalorder %s21, %s24
      %p30 = scmp.eq.s32.totalorder %s11, 0
      %p31 = por %p29, %p30
      %p32 = scmp.ne.s32.totalorder %s21, %s24
      %p33 = scmp.eq.s32.totalorder %s16, 1
      %p34 = por %p32, %p33
      %p35 = scmp.ne.s32.totalorder %s24, %s25
      %p36 = scmp.eq.s32.totalorder %s16, 0
      %p37 = por %p35, %p36
      %p38 = scmp.ne.s32.totalorder %s24, %s25
      %p39 = scmp.eq.s32.totalorder %s17, 1
      %p40 = por %p38, %p39
      %p42 = scmp.ne.s32.totalorder %s25, %s41
      %p43 = scmp.eq.s32.totalorder %s17, 0
      %p44 = por %p42, %p43
      %s46 = sadd.s32 %s45, 1
      %p49 = scmp.eq.s32.totalorder %s11, 1
      %p50 = scmp.ne.s32.totalorder %s45, %s47
      %p51 = scmp.eq.s32.totalorder %s11, 0
      %p52 = por %p50, %p51
      %p53 = scmp.ne.s32.totalorder %s45, %s47
      %p54 = scmp.eq.s32.totalorder %s16, 1
      %p55 = por %p53, %p54
      %p56 = scmp.ne.s32.totalorder %s47, %s48
      %p57 = scmp.eq.s32.totalorder %s16, 0
      %p58 = por %p56, %p57
      %p59 = scmp.ne.s32.totalorder %s47, %s48
      %p60 = scmp.eq.s32.totalorder %s17, 1
      %p61 = por %p59, %p60
      %p63 = scmp.ne.s32.totalorder %s48, %s62
      %p64 = scmp.eq.s32.totalorder %s17, 0
      %p65 = por %p63, %p64
      %s66 = ssub.s32 %s11, %s18
      %p67 = scmp.eq.s32.totalorder %s66, 0
      %s69 = sadd.s32 %s68, 1
      %s70 = scalar_select %p67, %s68, %s69
      %p73 = pneg %p67
      %p74 = scmp.eq.s32.totalorder %s11, 1
      %p75 = por %p73, %p74
      %p76 = scmp.ne.s32.totalorder %s68, %s71
      %p77 = scmp.eq.s32.totalorder %s11, 0
      %p78 = por %p76, %p77
      %p79 = scmp.ne.s32.totalorder %s68, %s71
      %p80 = scmp.eq.s32.totalorder %s16, 1
      %p81 = por %p79, %p80
      %p82 = scmp.ne.s32.totalorder %s71, %s72
      %p83 = scmp.eq.s32.totalorder %s16, 0
      %p84 = por %p82, %p83
      %p85 = scmp.ne.s32.totalorder %s71, %s72
      %p86 = scmp.eq.s32.totalorder %s17, 1
      %p87 = por %p85, %p86
      %p89 = scmp.ne.s32.totalorder %s72, %s88
      %p90 = scmp.eq.s32.totalorder %s17, 0
      %p91 = por %p89, %p90
      %p92 = scmp.le.s32.totalorder 1, %s11
      %p93 = scmp.lt.s32.totalorder %s11, 3
      %p94 = pnand %p92, %p93
      %p95 = pneg %p94
      // Predicated region
      $region9: #{tpu_custom_call.1} parent=5 // pred_check
        _
      $region10: #{tpu_custom_call.1} parent=5 // pred_check_branch
        %97 = sbr.rel (%p94) target = $region12
      $region11: #{tpu_custom_call.1} parent=5 // pred_region
        %s98 = ssub.s32 %s11, 1
        // Predicated region
        $region13: #{tpu_custom_call.1} parent=11 // pred_check
          %p99 = pneg %p58
        $region14: #{tpu_custom_call.1} parent=11 // pred_check_branch
          %101 = sbr.rel (%p99) target = $region16
        $region15: #{tpu_custom_call.1} parent=11 // pred_region
          _
        $region16: #{tpu_custom_call.1} parent=11 // pred_fallthru
          _
      $region12: #{tpu_custom_call.1} parent=5 // pred_fallthru
        _
      %p102 = scmp.lt.s32.totalorder %s11, 2
      // Predicated region
      $region17: #{tpu_custom_call.1} parent=5 // pred_check
        %p103 = pneg %p102
      $region18: #{tpu_custom_call.1} parent=5 // pred_check_branch
        %105 = sbr.rel (%p103) target = $region20
      $region19: #{tpu_custom_call.1} parent=5 // pred_region
        // Predicated region
        $region21: #{tpu_custom_call.1} parent=19 // pred_check
          %p106 = pneg %p31
        $region22: #{tpu_custom_call.1} parent=19 // pred_check_branch
          %108 = sbr.rel (%p106) target = $region24
        $region23: #{tpu_custom_call.1} parent=19 // pred_region
          %p109 = scmp.lt.s32.totalorder %s11, 1
          %s110 = scalar_select %p109, %s11, 1
          %s111 = smul.addr %s110, 4
          %s112 = smul.addr %s111, 8
          %s113 = scalar_lea.vmem %s0, %s112
        $region24: #{tpu_custom_call.1} parent=19 // pred_fallthru
          _
      $region20: #{tpu_custom_call.1} parent=5 // pred_fallthru
        _
      %p114 = scmp.le.s32.totalorder 1, %s11
      %p115 = scmp.lt.s32.totalorder %s11, 3
      %p116 = pnand %p114, %p115
      %p117 = pneg %p116
      // Predicated region
      $region25: #{tpu_custom_call.1} parent=5 // pred_check
        _
      $region26: #{tpu_custom_call.1} parent=5 // pred_check_branch
        %119 = sbr.rel (%p116) target = $region28
      $region27: #{tpu_custom_call.1} parent=5 // pred_region
        %s120 = ssub.s32 %s11, 1
        %p121 = scmp.lt.s32.totalorder %s16, 1
        %s122 = scalar_select %p121, %s16, 1
        %s123 = smul.addr %s122, 4
        %s124 = smul.addr %s123, 8
        %s125 = scalar_lea.vmem %s0, %s124
        %p126 = pneg %p37
        %p127 = pneg %p34
        %p128 = pneg %p58
        %p129 = pneg %p55
        %p130 = pneg %p84
        %p131 = pneg %p81
        %s132 = sand.u32 %s71, 1
        %s133 = scalar_lea.sflag [#allocation3], %s132
        %s134 = sand.u32 %s71, 1
        %s135 = smul.addr %s134, 8
        %s136 = scalar_lea.vmem [#allocation2], %s135
        %p137 = scmp.lt.s32.totalorder %s16, 1
        %s138 = scalar_select %p137, %s16, 1
        %s139 = smul.addr %s138, 4
        %s140 = smul.addr %s139, 8
        %s141 = scalar_lea.vmem %s0, %s140
        %v142 = vld [vmem:[%s1] sm:$0xff]
        %v143 = vld [vmem:[%s141] sm:$0xff]
        %v144 = vld [vmem:[%s141 + $0x8] sm:$0xff]
        %v145 = vld [vmem:[%s141 + $0x10] sm:$0xff]
        %v146 = vld [vmem:[%s141 + $0x18] sm:$0xff]
        %147 = vxpose.xlu0.b32.start [1/16] %v143, 128
        %148 = vxpose.xlu0.b32.cont [2/16] %v144, 128
        %149 = vxpose.xlu0.b32.cont [3/16] %v145, 128
        %150 = vxpose.xlu0.b32.cont [4/16] %v146, 128
        %151 = vxpose.xlu0.b32.cont [5/16] 0.0, 128
        %152 = vxpose.xlu0.b32.cont [6/16] 0.0, 128
        %153 = vxpose.xlu0.b32.cont [7/16] 0.0, 128
        %154 = vxpose.xlu0.b32.cont [8/16] 0.0, 128
        %155 = vxpose.xlu0.b32.cont [9/16] 0.0, 128
        %156 = vxpose.xlu0.b32.cont [10/16] 0.0, 128
        %157 = vxpose.xlu0.b32.cont [11/16] 0.0, 128
        %158 = vxpose.xlu0.b32.cont [12/16] 0.0, 128
        %159 = vxpose.xlu0.b32.cont [13/16] 0.0, 128
        %160 = vxpose.xlu0.b32.cont [14/16] 0.0, 128
        %161 = vxpose.xlu0.b32.cont [15/16] 0.0, 128
        %162 = vxpose.xlu0.b32.end [16/16] 0.0, 128
        %v163 = vpop.trf.xlu0
        %v164 = vpop.trf.xlu0
        %v165 = vpop.trf.xlu0
        %v166 = vpop.trf.xlu0
        %v167 = vpop.trf.xlu0
        %v168 = vpop.trf.xlu0
        %v169 = vpop.trf.xlu0
        %v170 = vpop.trf.xlu0
        %v171 = vpop.trf.xlu0
        %v172 = vpop.trf.xlu0
        %v173 = vpop.trf.xlu0
        %v174 = vpop.trf.xlu0
        %v175 = vpop.trf.xlu0
        %v176 = vpop.trf.xlu0
        %v177 = vpop.trf.xlu0
        %v178 = vpop.trf.xlu0
        %v179 = vadd.f32 %v163, %v142
        %vm180 = vcmask 261120
        %181 = vst.msk [vmem:[%s136] sm:$0xff] %vm180, %v179
        %s182 = sand.u32 %s71, 1
        %s183 = scalar_lea.sflag [#allocation3], %s182
        %s184 = sand.u32 %s71, 1
        %s185 = smul.addr %s184, 8
        %s186 = scalar_lea.vmem [#allocation2], %s185
        // Predicated region
        $region29: #{tpu_custom_call.1} parent=27 // pred_check
          %p187 = pneg %p81
        $region30: #{tpu_custom_call.1} parent=27 // pred_check_branch
          %189 = sbr.rel (%p187) target = $region32
        $region31: #{tpu_custom_call.1} parent=27 // pred_region
          %s191 = ssub.s32 128, 128
          %192 = vsyncadd %s183, %s191
          %s193 = smul.addr %s16, 128
          %s194 = scalar_lea.hbm %s2, %s193
          %s196 = sshll.u32 %s186, 4
          %s197 = int_to_ptr.vmem [resolvable:$true] %s196
          %199 = dma.vmem_to_hbm [thread:$0]  %s197, 128, %s194, %s183
        $region32: #{tpu_custom_call.1} parent=27 // pred_fallthru
          _
      $region28: #{tpu_custom_call.1} parent=5 // pred_fallthru
        _
      %p200 = scmp.le.s32.totalorder 2, %s11
      // Predicated region
      $region33: #{tpu_custom_call.1} parent=5 // pred_check
        %p201 = pneg %p200
      $region34: #{tpu_custom_call.1} parent=5 // pred_check_branch
        %203 = sbr.rel (%p201) target = $region36
      $region35: #{tpu_custom_call.1} parent=5 // pred_region
        %s204 = ssub.s32 %s11, 2
        // Predicated region
        $region37: #{tpu_custom_call.1} parent=35 // pred_check
          %p205 = pneg %p87
        $region38: #{tpu_custom_call.1} parent=35 // pred_check_branch
          %207 = sbr.rel (%p205) target = $region40
        $region39: #{tpu_custom_call.1} parent=35 // pred_region
          %s208 = sand.u32 %s72, 1
          %s209 = scalar_lea.sflag [#allocation3], %s208
          %s210 = sand.u32 %s72, 1
          %s211 = smul.addr %s210, 8
          %s212 = scalar_lea.vmem [#allocation2], %s211
          %213 = dma.done %s209, 128
        $region40: #{tpu_custom_call.1} parent=35 // pred_fallthru
          _
      $region36: #{tpu_custom_call.1} parent=5 // pred_fallthru
        _
    $region6: #{tpu_custom_call.1} parent=1 // loop_footer
      %s15 = sadd.s32 1, %s11
    $region7: #{tpu_custom_call.1} parent=1 // loop_footer_branch
      %10 = sbr.rel target = $region3
    $region8: #{tpu_custom_call.1} parent=1 // loop_exit
      _
    %214 = vsyncpa [#allocation3], 1
    %s215 = scalar_lea.sflag [#allocation3], 1
    %216 = vsyncpa %s215, 1

</llo_original>
